<compile_context>
chip_gen: v5e
topology: v5e:2x2
jax: 0.10.0
libtpu: 0.0.40
codegen_flags: <defaults>
</compile_context>

<pallas_src>
import functools

import jax
import jax.numpy as jnp
from jax.experimental import pallas as pl
from jax.experimental.pallas import tpu as pltpu


# --------------------------------------------------------------------------
# in-kernel helpers (fp32 math)
# --------------------------------------------------------------------------

def _layernorm_f32(x, gamma, beta, eps):
    mean = jnp.mean(x, axis=-1, keepdims=True)
    var = jnp.mean(jnp.square(x - mean), axis=-1, keepdims=True)
    y = (x - mean) * jax.lax.rsqrt(var + eps)
    return y * gamma + beta


def _gelu_tanh(x):
    # gelu(x, approximate='tanh') in f32
    c = jnp.float32(0.7978845608028654)  # sqrt(2/pi)
    return 0.5 * x * (1.0 + jnp.tanh(c * (x + 0.044715 * x * x * x)))


# --------------------------------------------------------------------------
# Pallas kernels
# --------------------------------------------------------------------------

def _patch_embed_kernel(p_ref, w_ref, b_ref, pos_ref, o_ref):
    # (1, S, CPP) patches @ (CPP, D) bf16 weight + bias + pos_emb -> (1, S, D) f32
    p = p_ref[0].astype(jnp.bfloat16)
    y = jnp.dot(p, w_ref[...], preferred_element_type=jnp.float32)
    y = y + b_ref[...].astype(jnp.float32) + pos_ref[...].astype(jnp.float32)
    o_ref[...] = y[None, :, :].astype(o_ref.dtype)


def _attn_block_kernel(x_ref, g_ref, bt_ref, wqkv_ref, bqkv_ref, wo_ref, bo_ref,
                       o_ref, *, eps, D, num_heads, head_dim, scale):
    # Fused: LayerNorm1 + QKV projection + per-head attention + out-proj +
    # residual add, for one batch element (block (1, S, D)).
    # Heads are handled as static lane slices -> no physical (B,S,H,Dh)
    # transposes ever hit HBM.
    x = x_ref[0].astype(jnp.float32)                                  # (S, D)
    ln = _layernorm_f32(x, g_ref[...].astype(jnp.float32),
                        bt_ref[...].astype(jnp.float32), eps)
    qkv = jnp.dot(ln.astype(jnp.bfloat16), wqkv_ref[...],
                  preferred_element_type=jnp.float32)
    qkv = qkv + bqkv_ref[...].astype(jnp.float32)                     # (S, 3D)
    q = (qkv[:, 0 * D:1 * D] * scale).astype(jnp.bfloat16)            # scale Q once
    k = qkv[:, 1 * D:2 * D].astype(jnp.bfloat16)
    v = qkv[:, 2 * D:3 * D].astype(jnp.bfloat16)

    dn = (((1,), (1,)), ((), ()))                                     # q @ k^T
    outs = []
    for h in range(num_heads):
        lo = h * head_dim
        qh = q[:, lo:lo + head_dim]
        kh = k[:, lo:lo + head_dim]
        vh = v[:, lo:lo + head_dim]
        s = jax.lax.dot_general(qh, kh, dn, preferred_element_type=jnp.float32)
        s = s - jnp.max(s, axis=-1, keepdims=True)
        p = jnp.exp(s)
        p = p * pl.reciprocal(jnp.sum(p, axis=-1, keepdims=True), approx=True)
        outs.append(jnp.dot(p.astype(jnp.bfloat16), vh,
                            preferred_element_type=jnp.float32))
    attn = jnp.concatenate(outs, axis=-1).astype(jnp.bfloat16)        # (S, D)

    y = jnp.dot(attn, wo_ref[...], preferred_element_type=jnp.float32)
    y = y + bo_ref[...].astype(jnp.float32)
    o_ref[...] = (x + y)[None, :, :].astype(o_ref.dtype)


def _ln_mlp_res_kernel(x_ref, g_ref, bt_ref, w1_ref, b1_ref, w2_ref, b2_ref,
                       o_ref, *, eps):
    # fused LayerNorm2 + fc1 + gelu(tanh) + fc2 + residual add
    x = x_ref[...].astype(jnp.float32)
    ln = _layernorm_f32(x, g_ref[...].astype(jnp.float32),
                        bt_ref[...].astype(jnp.float32), eps)
    h = jnp.dot(ln.astype(jnp.bfloat16), w1_ref[...],
                preferred_element_type=jnp.float32)
    h = _gelu_tanh(h + b1_ref[...].astype(jnp.float32))
    y = jnp.dot(h.astype(jnp.bfloat16), w2_ref[...],
                preferred_element_type=jnp.float32)
    y = y + b2_ref[...].astype(jnp.float32)
    o_ref[...] = (x + y).astype(o_ref.dtype)


def _layernorm_kernel(x_ref, g_ref, b_ref, o_ref, *, eps):
    x = x_ref[...].astype(jnp.float32)
    y = _layernorm_f32(x, g_ref[...].astype(jnp.float32),
                       b_ref[...].astype(jnp.float32), eps)
    o_ref[...] = y.astype(o_ref.dtype)


# --------------------------------------------------------------------------
# Pallas wrappers
# --------------------------------------------------------------------------

_PARALLEL1 = pltpu.CompilerParams(
    dimension_semantics=("parallel",),
    vmem_limit_bytes=64 * 1024 * 1024,
)


def _row_tile(M, target=256):
    """Largest row tile <= target that divides M (keeps sublane multiple of 8)."""
    if M <= target:
        return M
    t = target
    while M % t:
        t -= 8
    return max(t, 8)


def pallas_patch_embed(patches, w, b, pos):
    B, S, CPP = patches.shape
    D = w.shape[1]
    return pl.pallas_call(
        _patch_embed_kernel,
        out_shape=jax.ShapeDtypeStruct((B, S, D), jnp.float32),
        grid=(B,),
        in_specs=[
            pl.BlockSpec((1, S, CPP), lambda bi: (bi, 0, 0)),
            pl.BlockSpec((CPP, D), lambda bi: (0, 0)),
            pl.BlockSpec((1, D), lambda bi: (0, 0)),
            pl.BlockSpec((S, D), lambda bi: (0, 0)),
        ],
        out_specs=pl.BlockSpec((1, S, D), lambda bi: (bi, 0, 0)),
        compiler_params=_PARALLEL1,
    )(patches, w, b.reshape(1, D), pos)


def pallas_attention_block(x, gamma, beta, w_qkv, b_qkv, w_o, b_o,
                           num_heads, head_dim, eps):
    B, S, D = x.shape
    N = w_qkv.shape[1]  # 3D
    scale = head_dim ** (-0.5)
    bspec = pl.BlockSpec((1, S, D), lambda bi: (bi, 0, 0))
    return pl.pallas_call(
        functools.partial(_attn_block_kernel, eps=eps, D=D,
                          num_heads=num_heads, head_dim=head_dim, scale=scale),
        out_shape=jax.ShapeDtypeStruct((B, S, D), jnp.float32),
        grid=(B,),
        in_specs=[
            bspec,
            pl.BlockSpec((1, D), lambda bi: (0, 0)),
            pl.BlockSpec((1, D), lambda bi: (0, 0)),
            pl.BlockSpec((D, N), lambda bi: (0, 0)),
            pl.BlockSpec((1, N), lambda bi: (0, 0)),
            pl.BlockSpec((D, D), lambda bi: (0, 0)),
            pl.BlockSpec((1, D), lambda bi: (0, 0)),
        ],
        out_specs=bspec,
        compiler_params=_PARALLEL1,
    )(x, gamma.reshape(1, D), beta.reshape(1, D),
      w_qkv, b_qkv.reshape(1, N), w_o, b_o.reshape(1, D))


def pallas_ln_mlp_residual(x, gamma, beta, w1, b1, w2, b2, eps):
    M, D = x.shape
    I = w1.shape[1]
    tm = _row_tile(M)
    row_spec = pl.BlockSpec((tm, D), lambda i: (i, 0))
    return pl.pallas_call(
        functools.partial(_ln_mlp_res_kernel, eps=eps),
        out_shape=jax.ShapeDtypeStruct((M, D), jnp.float32),
        grid=(M // tm,),
        in_specs=[
            row_spec,
            pl.BlockSpec((1, D), lambda i: (0, 0)),
            pl.BlockSpec((1, D), lambda i: (0, 0)),
            pl.BlockSpec((D, I), lambda i: (0, 0)),
            pl.BlockSpec((1, I), lambda i: (0, 0)),
            pl.BlockSpec((I, D), lambda i: (0, 0)),
            pl.BlockSpec((1, D), lambda i: (0, 0)),
        ],
        out_specs=row_spec,
        compiler_params=_PARALLEL1,
    )(x, gamma.reshape(1, D), beta.reshape(1, D),
      w1, b1.reshape(1, I), w2, b2.reshape(1, D))


def pallas_layernorm(x, gamma, beta, eps):
    M, D = x.shape
    tm = _row_tile(M)
    row_spec = pl.BlockSpec((tm, D), lambda i: (i, 0))
    return pl.pallas_call(
        functools.partial(_layernorm_kernel, eps=eps),
        out_shape=jax.ShapeDtypeStruct((M, D), jnp.float32),
        grid=(M // tm,),
        in_specs=[
            row_spec,
            pl.BlockSpec((1, D), lambda i: (0, 0)),
            pl.BlockSpec((1, D), lambda i: (0, 0)),
        ],
        out_specs=row_spec,
        compiler_params=_PARALLEL1,
    )(x, gamma.reshape(1, D), beta.reshape(1, D))


# --------------------------------------------------------------------------
# Parameter init (deterministic, synthetic)
# --------------------------------------------------------------------------

def init_params(key, cfg):
    D = cfg["hidden_size"]
    I = cfg["intermediate_size"]
    C = cfg["num_channels"]
    P = cfg["patch_size"]
    n_pos = (cfg["image_size"] // P) ** 2

    def nrm(k, shape, scale=0.02):
        return (scale * jax.random.normal(k, shape)).astype(jnp.float32)

    keys = jax.random.split(key, 4 + cfg["num_hidden_layers"])
    patch_w = nrm(keys[0], (D, C, P, P))                 # PyTorch Conv2d (out,in,kh,kw)
    params = {
        "patch_w": patch_w.reshape(D, C * P * P).T.astype(jnp.bfloat16),  # (C*P*P, D)
        "patch_b": nrm(keys[1], (D,)),
        "pos_emb": nrm(keys[2], (n_pos, D)),
        "post_ln_g": jnp.ones((D,), jnp.float32),
        "post_ln_b": jnp.zeros((D,), jnp.float32),
        "layers": [],
    }
    for li in range(cfg["num_hidden_layers"]):
        lk = jax.random.split(keys[4 + li], 10)
        q_w, k_w, v_w = nrm(lk[0], (D, D)), nrm(lk[1], (D, D)), nrm(lk[2], (D, D))
        q_b, k_b, v_b = nrm(lk[3], (D,)), nrm(lk[4], (D,)), nrm(lk[5], (D,))
        layer = {
            "ln1_g": jnp.ones((D,), jnp.float32), "ln1_b": jnp.zeros((D,), jnp.float32),
            "qkv_w": jnp.concatenate([q_w, k_w, v_w], axis=1).astype(jnp.bfloat16),  # (D, 3D)
            "qkv_b": jnp.concatenate([q_b, k_b, v_b], axis=0),                        # (3D,)
            "o_w": nrm(lk[6], (D, D)).astype(jnp.bfloat16),
            "o_b": jnp.zeros((D,), jnp.float32),
            "ln2_g": jnp.ones((D,), jnp.float32), "ln2_b": jnp.zeros((D,), jnp.float32),
            "fc1_w": nrm(lk[7], (D, I)).astype(jnp.bfloat16),
            "fc1_b": nrm(lk[8], (I,)),
            "fc2_w": nrm(lk[9], (I, D)).astype(jnp.bfloat16),
            "fc2_b": jnp.zeros((D,), jnp.float32),
        }
        params["layers"].append(layer)
    return params


# --------------------------------------------------------------------------
# Model forward (glue in plain JAX, all heavy ops in fused Pallas kernels)
# --------------------------------------------------------------------------

def siglip_vision_forward(params, pixel_values, cfg):
    B, C, H, W = pixel_values.shape
    P = cfg["patch_size"]
    D = cfg["hidden_size"]
    nh = cfg["num_attention_heads"]
    dh = D // nh
    eps = cfg["layer_norm_eps"]
    nH, nW = H // P, W // P
    S = nH * nW
    M = B * S

    # ---- patch embedding: conv(stride=kernel=P) == patchify + fused matmul ----
    patches = pixel_values.reshape(B, C, nH, P, nW, P)
    patches = patches.transpose(0, 2, 4, 1, 3, 5).reshape(B, S, C * P * P)
    x = pallas_patch_embed(patches, params["patch_w"], params["patch_b"],
                           params["pos_emb"])                    # (B, S, D) f32

    # ---- encoder layers: 2 fused pallas_calls per layer ----
    for layer in params["layers"]:
        # fused LN1 + QKV + per-head attention + out-proj + residual (per batch)
        x = pallas_attention_block(x, layer["ln1_g"], layer["ln1_b"],
                                   layer["qkv_w"], layer["qkv_b"],
                                   layer["o_w"], layer["o_b"],
                                   nh, dh, eps)                  # (B, S, D) f32
        # fused LN2 + MLP + residual (row-tiled over B*S)
        x = pallas_ln_mlp_residual(x.reshape(M, D),
                                   layer["ln2_g"], layer["ln2_b"],
                                   layer["fc1_w"], layer["fc1_b"],
                                   layer["fc2_w"], layer["fc2_b"],
                                   eps).reshape(B, S, D)

    # ---- post layernorm ----
    out = pallas_layernorm(x.reshape(M, D), params["post_ln_g"],
                           params["post_ln_b"], eps)
    return out.reshape(B, S, D)


# --------------------------------------------------------------------------
# main
# --------------------------------------------------------------------------

if __name__ == "__main__":
    cfg = dict(
        hidden_size=64,
        intermediate_size=128,
        num_hidden_layers=2,
        num_attention_heads=4,
        num_channels=3,
        image_size=32,
        patch_size=8,
        layer_norm_eps=1e-6,
    )

    key = jax.random.PRNGKey(0)
    k_param, k_input = jax.random.split(key)
    params = init_params(k_param, cfg)

    B = 2
    pixel_values = jax.random.normal(
        k_input, (B, cfg["num_channels"], cfg["image_size"], cfg["image_size"]),
        dtype=jnp.float32)

    out = siglip_vision_forward(params, pixel_values, cfg)
    out = jax.block_until_ready(out)

    expected_seq = (cfg["image_size"] // cfg["patch_size"]) ** 2
    assert out.shape == (B, expected_seq, cfg["hidden_size"]), out.shape
    assert bool(jnp.all(jnp.isfinite(out)))
    print("KERNEL_OK")
</pallas_src>

<mosaic_0001>
module attributes {stable_mosaic.version = 11 : i64} {
  func.func @_patch_embed_kernel(%arg0: i32, %arg1: memref<1x16x192xf32, #tpu.memory_space<vmem>>, %arg2: memref<192x64xbf16, #tpu.memory_space<vmem>>, %arg3: memref<1x64xf32, #tpu.memory_space<vmem>>, %arg4: memref<16x64xf32, #tpu.memory_space<vmem>>, %arg5: memref<1x16x64xf32, #tpu.memory_space<vmem>>) attributes {dimension_semantics = [#tpu.dimension_semantics<parallel>], iteration_bounds = array<i64: 2>, scalar_prefetch = 0 : i64, scratch_operands = 0 : i64, tpu.core_type = #tpu.core_type<tc>, window_params = [{transform_indices = @transform_0, window_bounds = array<i64: 1, 16, 192>}, {pipeline_mode = #tpu.pipeline_mode<synchronous>, transform_indices = @transform_1, window_bounds = array<i64: 192, 64>}, {pipeline_mode = #tpu.pipeline_mode<synchronous>, transform_indices = @transform_2, window_bounds = array<i64: 1, 64>}, {pipeline_mode = #tpu.pipeline_mode<synchronous>, transform_indices = @transform_3, window_bounds = array<i64: 16, 64>}, {transform_indices = @transform_4, window_bounds = array<i64: 1, 16, 64>}]} {
    %c0 = arith.constant 0 : index
    %c0_0 = arith.constant 0 : index
    %c0_1 = arith.constant 0 : index
    %0 = vector.load %arg1[%c0, %c0_0, %c0_1] : memref<1x16x192xf32, #tpu.memory_space<vmem>>, vector<1x16x192xf32>
    %1 = vector.shape_cast %0 : vector<1x16x192xf32> to vector<16x192xf32>
    %2 = arith.truncf %1 : vector<16x192xf32> to vector<16x192xbf16>
    %c0_2 = arith.constant 0 : index
    %c0_3 = arith.constant 0 : index
    %3 = vector.load %arg2[%c0_2, %c0_3] : memref<192x64xbf16, #tpu.memory_space<vmem>>, vector<192x64xbf16>
    %cst = arith.constant dense<0.000000e+00> : vector<16x64xf32>
    %4 = tpu.matmul %2, %3, %cst {dimension_numbers = #tpu.dot_dimension_numbers<[1], [0], [0], [1], [0, 0, 1, 1], [], []>} : vector<16x192xbf16>, vector<192x64xbf16>, vector<16x64xf32> -> vector<16x64xf32>
    %c0_4 = arith.constant 0 : index
    %c0_5 = arith.constant 0 : index
    %5 = vector.load %arg3[%c0_4, %c0_5] : memref<1x64xf32, #tpu.memory_space<vmem>>, vector<1x64xf32>
    %6 = vector.broadcast %5 : vector<1x64xf32> to vector<16x64xf32>
    %7 = arith.addf %4, %6 : vector<16x64xf32>
    %c0_6 = arith.constant 0 : index
    %c0_7 = arith.constant 0 : index
    %8 = vector.load %arg4[%c0_6, %c0_7] : memref<16x64xf32, #tpu.memory_space<vmem>>, vector<16x64xf32>
    %9 = arith.addf %7, %8 : vector<16x64xf32>
    %10 = vector.shape_cast %9 : vector<16x64xf32> to vector<1x16x64xf32>
    %c0_8 = arith.constant 0 : index
    %c0_9 = arith.constant 0 : index
    %c0_10 = arith.constant 0 : index
    %11 = vector.load %arg5[%c0_8, %c0_9, %c0_10] : memref<1x16x64xf32, #tpu.memory_space<vmem>>, vector<1x16x64xf32>
    tpu.vector_store %arg5[%c0_8, %c0_9, %c0_10], %10 {strides = array<i32>} : memref<1x16x64xf32, #tpu.memory_space<vmem>>, vector<1x16x64xf32>,
    return
  }
  func.func @transform_0(%arg0: i32) -> (i32, i32, i32) {
    %c0_i32 = arith.constant 0 : i32
    %c0_i32_0 = arith.constant 0 : i32
    %c0_i32_1 = arith.constant 0 : i32
    return %arg0, %c0_i32, %c0_i32_0 : i32, i32, i32
  }
  func.func @transform_1(%arg0: i32) -> (i32, i32) {
    %c0_i32 = arith.constant 0 : i32
    %c0_i32_0 = arith.constant 0 : i32
    %c0_i32_1 = arith.constant 0 : i32
    return %c0_i32, %c0_i32_0 : i32, i32
  }
  func.func @transform_2(%arg0: i32) -> (i32, i32) {
    %c0_i32 = arith.constant 0 : i32
    %c0_i32_0 = arith.constant 0 : i32
    %c0_i32_1 = arith.constant 0 : i32
    return %c0_i32, %c0_i32_0 : i32, i32
  }
  func.func @transform_3(%arg0: i32) -> (i32, i32) {
    %c0_i32 = arith.constant 0 : i32
    %c0_i32_0 = arith.constant 0 : i32
    %c0_i32_1 = arith.constant 0 : i32
    return %c0_i32, %c0_i32_0 : i32, i32
  }
  func.func @transform_4(%arg0: i32) -> (i32, i32, i32) {
    %c0_i32 = arith.constant 0 : i32
    %c0_i32_0 = arith.constant 0 : i32
    %c0_i32_1 = arith.constant 0 : i32
    return %arg0, %c0_i32, %c0_i32_0 : i32, i32, i32
  }
}

</mosaic_0001>

<llo_original>
// kernel: tpu_custom_call.1
$region0: #{tpu_custom_call.1}
  #allocation0 [shape = 'u32[]', space=smem, size = 0x4, offset = 0x4, fixed_abs, tag = 'smem constant byte address 0x4 - core index']
  #allocation1 [shape = 'u32[72,128]{1,0:T(1,128)}', space=vmem, size = 0x9000, scoped, tag = 'internal scratch']
  %s0 = inlined_call_operand.vmem [shape: f32[2,16,192], index: 0, kind: input, shape index: {}]
  %s1 = inlined_call_operand.vmem [shape: bf16[192,64], index: 1, kind: input, shape index: {}]
  %s2 = inlined_call_operand.vmem [shape: f32[1,64], index: 2, kind: input, shape index: {}]
  %s3 = inlined_call_operand.vmem [shape: f32[16,64], index: 3, kind: input, shape index: {}]
  %s4 = inlined_call_operand.hbm [shape: f32[2,16,64], index: 4, kind: output, shape index: {}]
  %s5 = sld [smem:[#allocation0]]
  $region49: #{tpu_custom_call.1} parent=0
    _
  %s7 = ssub.s32 1, %s5
  %s8 = scalar_select 0, %s7, %s5
  $region1: #{tpu_custom_call.1} parent=0
    #allocation2 [shape = 'u8[16384]{0}', space=vmem, size = 0x4000, scoped, tag = 'output window, operand 0']
    #allocation3 [shape = 's32[2]{0}', space=sflag, size = 0x8, scoped, tag = 'scoped memory for tpu_custom_call.1']
    %9 = vsyncpa [#allocation3], 0
    %s10 = scalar_lea.sflag [#allocation3], 1
    %11 = vsyncpa %s10, 0
    loop: start=0, step=1, limit=4
    $region2: #{tpu_custom_call.1} parent=1 // loop_pre_header
      _
    $region3: #{tpu_custom_call.1} parent=1 // loop_header
      %s13 = sphi 0, %s17
      %p14 = scmp.ge.s32.totalorder %s13, 4
      %s23 = sphi 0, %s25
      %s26 = sphi 0, %s23
      %s27 = sphi 0, %s26
      %s43 = sphi 0, %s27
      %s47 = sphi 0, %s47
      %s49 = sphi 0, %s47
      %s50 = sphi 0, %s49
      %s64 = sphi 0, %s50
      %s68 = sphi 0, %s68
      %s70 = sphi 0, %s68
      %s71 = sphi 0, %s70
      %s85 = sphi 0, %s71
      %s89 = sphi 0, %s89
      %s91 = sphi 0, %s89
      %s92 = sphi 0, %s91
      %s106 = sphi 0, %s92
      %s112 = sphi 0, %s114
      %s115 = sphi 0, %s112
      %s116 = sphi 0, %s115
      %s132 = sphi 0, %s116
    $region4: #{tpu_custom_call.1} parent=1 // loop_header_branch
      %16 = sbr.rel (%p14) target = $region8
    $region5: #{tpu_custom_call.1} parent=1 // loop_body
      %s18 = ssub.s32 %s13, 1
      %s19 = ssub.s32 %s13, 2
      %s20 = sadd.s32 %s13, 1
      %s21 = ssub.s32 %s13, %s20
      %p22 = scmp.eq.s32.totalorder %s21, 0
      %s24 = sadd.s32 %s23, 1
      %s25 = scalar_select %p22, %s23, %s24
      %p28 = pneg %p22
      %p29 = scmp.eq.s32.totalorder %s13, 1
      %p30 = por %p28, %p29
      %p31 = scmp.ne.s32.totalorder %s23, %s26
      %p32 = scmp.eq.s32.totalorder %s13, 0
      %p33 = por %p31, %p32
      %p34 = scmp.ne.s32.totalorder %s23, %s26
      %p35 = scmp.eq.s32.totalorder %s18, 1
      %p36 = por %p34, %p35
      %p37 = scmp.ne.s32.totalorder %s26, %s27
      %p38 = scmp.eq.s32.totalorder %s18, 0
      %p39 = por %p37, %p38
      %p40 = scmp.ne.s32.totalorder %s26, %s27
      %p41 = scmp.eq.s32.totalorder %s19, 1
      %p42 = por %p40, %p41
      %p44 = scmp.ne.s32.totalorder %s27, %s43
      %p45 = scmp.eq.s32.totalorder %s19, 0
      %p46 = por %p44, %p45
      %s48 = sadd.s32 %s47, 1
      %p51 = scmp.eq.s32.totalorder %s13, 1
      %p52 = scmp.ne.s32.totalorder %s47, %s49
      %p53 = scmp.eq.s32.totalorder %s13, 0
      %p54 = por %p52, %p53
      %p55 = scmp.ne.s32.totalorder %s47, %s49
      %p56 = scmp.eq.s32.totalorder %s18, 1
      %p57 = por %p55, %p56
      %p58 = scmp.ne.s32.totalorder %s49, %s50
      %p59 = scmp.eq.s32.totalorder %s18, 0
      %p60 = por %p58, %p59
      %p61 = scmp.ne.s32.totalorder %s49, %s50
      %p62 = scmp.eq.s32.totalorder %s19, 1
      %p63 = por %p61, %p62
      %p65 = scmp.ne.s32.totalorder %s50, %s64
      %p66 = scmp.eq.s32.totalorder %s19, 0
      %p67 = por %p65, %p66
      %s69 = sadd.s32 %s68, 1
      %p72 = scmp.eq.s32.totalorder %s13, 1
      %p73 = scmp.ne.s32.totalorder %s68, %s70
      %p74 = scmp.eq.s32.totalorder %s13, 0
      %p75 = por %p73, %p74
      %p76 = scmp.ne.s32.totalorder %s68, %s70
      %p77 = scmp.eq.s32.totalorder %s18, 1
      %p78 = por %p76, %p77
      %p79 = scmp.ne.s32.totalorder %s70, %s71
      %p80 = scmp.eq.s32.totalorder %s18, 0
      %p81 = por %p79, %p80
      %p82 = scmp.ne.s32.totalorder %s70, %s71
      %p83 = scmp.eq.s32.totalorder %s19, 1
      %p84 = por %p82, %p83
      %p86 = scmp.ne.s32.totalorder %s71, %s85
      %p87 = scmp.eq.s32.totalorder %s19, 0
      %p88 = por %p86, %p87
      %s90 = sadd.s32 %s89, 1
      %p93 = scmp.eq.s32.totalorder %s13, 1
      %p94 = scmp.ne.s32.totalorder %s89, %s91
      %p95 = scmp.eq.s32.totalorder %s13, 0
      %p96 = por %p94, %p95
      %p97 = scmp.ne.s32.totalorder %s89, %s91
      %p98 = scmp.eq.s32.totalorder %s18, 1
      %p99 = por %p97, %p98
      %p100 = scmp.ne.s32.totalorder %s91, %s92
      %p101 = scmp.eq.s32.totalorder %s18, 0
      %p102 = por %p100, %p101
      %p103 = scmp.ne.s32.totalorder %s91, %s92
      %p104 = scmp.eq.s32.totalorder %s19, 1
      %p105 = por %p103, %p104
      %p107 = scmp.ne.s32.totalorder %s92, %s106
      %p108 = scmp.eq.s32.totalorder %s19, 0
      %p109 = por %p107, %p108
      %s110 = ssub.s32 %s13, %s20
      %p111 = scmp.eq.s32.totalorder %s110, 0
      %s113 = sadd.s32 %s112, 1
      %s114 = scalar_select %p111, %s112, %s113
      %p117 = pneg %p111
      %p118 = scmp.eq.s32.totalorder %s13, 1
      %p119 = por %p117, %p118
      %p120 = scmp.ne.s32.totalorder %s112, %s115
      %p121 = scmp.eq.s32.totalorder %s13, 0
      %p122 = por %p120, %p121
      %p123 = scmp.ne.s32.totalorder %s112, %s115
      %p124 = scmp.eq.s32.totalorder %s18, 1
      %p125 = por %p123, %p124
      %p126 = scmp.ne.s32.totalorder %s115, %s116
      %p127 = scmp.eq.s32.totalorder %s18, 0
      %p128 = por %p126, %p127
      %p129 = scmp.ne.s32.totalorder %s115, %s116
      %p130 = scmp.eq.s32.totalorder %s19, 1
      %p131 = por %p129, %p130
      %p133 = scmp.ne.s32.totalorder %s116, %s132
      %p134 = scmp.eq.s32.totalorder %s19, 0
      %p135 = por %p133, %p134
      %p136 = scmp.le.s32.totalorder 1, %s13
      %p137 = scmp.lt.s32.totalorder %s13, 3
      %p138 = pnand %p136, %p137
      %p139 = pneg %p138
      // Predicated region
      $region9: #{tpu_custom_call.1} parent=5 // pred_check
        _
      $region10: #{tpu_custom_call.1} parent=5 // pred_check_branch
        %141 = sbr.rel (%p138) target = $region12
      $region11: #{tpu_custom_call.1} parent=5 // pred_region
        %s142 = ssub.s32 %s13, 1
        // Predicated region
        $region13: #{tpu_custom_call.1} parent=11 // pred_check
          %p143 = pneg %p60
        $region14: #{tpu_custom_call.1} parent=11 // pred_check_branch
          %145 = sbr.rel (%p143) target = $region16
        $region15: #{tpu_custom_call.1} parent=11 // pred_region
          _
        $region16: #{tpu_custom_call.1} parent=11 // pred_fallthru
          _
        // Predicated region
        $region17: #{tpu_custom_call.1} parent=11 // pred_check
          %p146 = pneg %p81
        $region18: #{tpu_custom_call.1} parent=11 // pred_check_branch
          %148 = sbr.rel (%p146) target = $region20
        $region19: #{tpu_custom_call.1} parent=11 // pred_region
          _
        $region20: #{tpu_custom_call.1} parent=11 // pred_fallthru
          _
        // Predicated region
        $region21: #{tpu_custom_call.1} parent=11 // pred_check
          %p149 = pneg %p102
        $region22: #{tpu_custom_call.1} parent=11 // pred_check_branch
          %151 = sbr.rel (%p149) target = $region24
        $region23: #{tpu_custom_call.1} parent=11 // pred_region
          _
        $region24: #{tpu_custom_call.1} parent=11 // pred_fallthru
          _
      $region12: #{tpu_custom_call.1} parent=5 // pred_fallthru
        _
      %p152 = scmp.lt.s32.totalorder %s13, 2
      // Predicated region
      $region25: #{tpu_custom_call.1} parent=5 // pred_check
        %p153 = pneg %p152
      $region26: #{tpu_custom_call.1} parent=5 // pred_check_branch
        %155 = sbr.rel (%p153) target = $region28
      $region27: #{tpu_custom_call.1} parent=5 // pred_region
        // Predicated region
        $region29: #{tpu_custom_call.1} parent=27 // pred_check
          %p156 = pneg %p33
        $region30: #{tpu_custom_call.1} parent=27 // pred_check_branch
          %158 = sbr.rel (%p156) target = $region32
        $region31: #{tpu_custom_call.1} parent=27 // pred_region
          %p159 = scmp.lt.s32.totalorder %s13, 1
          %s160 = scalar_select %p159, %s13, 1
          %s161 = smul.addr %s160, 4
          %s162 = smul.addr %s161, 8
          %s163 = scalar_lea.vmem %s0, %s162
        $region32: #{tpu_custom_call.1} parent=27 // pred_fallthru
          _
      $region28: #{tpu_custom_call.1} parent=5 // pred_fallthru
        _
      %p164 = scmp.le.s32.totalorder 1, %s13
      %p165 = scmp.lt.s32.totalorder %s13, 3
      %p166 = pnand %p164, %p165
      %p167 = pneg %p166
      // Predicated region
      $region33: #{tpu_custom_call.1} parent=5 // pred_check
        _
      $region34: #{tpu_custom_call.1} parent=5 // pred_check_branch
        %169 = sbr.rel (%p166) target = $region36
      $region35: #{tpu_custom_call.1} parent=5 // pred_region
        %s170 = ssub.s32 %s13, 1
        %p171 = scmp.lt.s32.totalorder %s18, 1
        %s172 = scalar_select %p171, %s18, 1
        %s173 = smul.addr %s172, 4
        %s174 = smul.addr %s173, 8
        %s175 = scalar_lea.vmem %s0, %s174
        %p176 = pneg %p39
        %p177 = pneg %p36
        %p178 = pneg %p60
        %p179 = pneg %p57
        %p180 = pneg %p81
        %p181 = pneg %p78
        %p182 = pneg %p102
        %p183 = pneg %p99
        %p184 = pneg %p128
        %p185 = pneg %p125
        %s186 = sand.u32 %s115, 1
        %s187 = scalar_lea.sflag [#allocation3], %s186
        %s188 = sand.u32 %s115, 1
        %s189 = smul.addr %s188, 16
        %s190 = scalar_lea.vmem [#allocation2], %s189
        %p191 = scmp.lt.s32.totalorder %s18, 1
        %s192 = scalar_select %p191, %s18, 1
        %s193 = smul.addr %s192, 4
        %s194 = smul.addr %s193, 8
        %s195 = scalar_lea.vmem %s0, %s194
        %v197 = vld [vmem:[%s195] sm:$0xff]
        %v198 = vld [vmem:[%s195 + $0x8] sm:$0xff]
        %v199 = vld [vmem:[%s195 + $0x10] sm:$0xff]
        %v200 = vld [vmem:[%s195 + $0x18] sm:$0xff]
        %v201 = vpack.c.bf16 %v199, %v197
        %v202 = vpack.c.bf16 %v200, %v198
        %v203 = vld [vmem:[%s1] sm:$0xf]
        %v204 = vld [vmem:[%s1 + $0x4] sm:$0xf]
        %v205 = vld [vmem:[%s1 + $0x8] sm:$0xf]
        %v206 = vld [vmem:[%s1 + $0xc] sm:$0xf]
        %v207 = vld [vmem:[%s1 + $0x10] sm:$0xf]
        %v208 = vld [vmem:[%s1 + $0x14] sm:$0xf]
        %v209 = vld [vmem:[%s1 + $0x18] sm:$0xf]
        %v210 = vld [vmem:[%s1 + $0x1c] sm:$0xf]
        %v211 = vld [vmem:[%s1 + $0x20] sm:$0xf]
        %v212 = vld [vmem:[%s1 + $0x24] sm:$0xf]
        %v213 = vld [vmem:[%s1 + $0x28] sm:$0xf]
        %v214 = vld [vmem:[%s1 + $0x2c] sm:$0xf]
        %v215 = vld [vmem:[%s1 + $0x30] sm:$0xf]
        %v216 = vld [vmem:[%s1 + $0x34] sm:$0xf]
        %v217 = vld [vmem:[%s1 + $0x38] sm:$0xf]
        %v218 = vld [vmem:[%s1 + $0x3c] sm:$0xf]
        %v219 = vld [vmem:[%s1 + $0x40] sm:$0xf]
        %v220 = vld [vmem:[%s1 + $0x44] sm:$0xf]
        %v221 = vld [vmem:[%s1 + $0x48] sm:$0xf]
        %v222 = vld [vmem:[%s1 + $0x4c] sm:$0xf]
        %v223 = vld [vmem:[%s1 + $0x50] sm:$0xf]
        %v224 = vld [vmem:[%s1 + $0x54] sm:$0xf]
        %v225 = vld [vmem:[%s1 + $0x58] sm:$0xf]
        %v226 = vld [vmem:[%s1 + $0x5c] sm:$0xf]
        %v227 = vld [vmem:[%s2] sm:$0x1]
        %v229 = vperm.slane %v227, 0
        %v255 = vunpack.c.l.b16 %v203
        %v256 = vunpack.c.l.b16 %v204
        %v257 = vunpack.c.l.b16 %v205
        %v258 = vunpack.c.l.b16 %v206
        %v259 = vunpack.c.l.b16 %v207
        %v260 = vunpack.c.l.b16 %v208
        %v261 = vunpack.c.l.b16 %v209
        %v262 = vunpack.c.l.b16 %v210
        %v263 = vunpack.c.l.b16 %v211
        %v264 = vunpack.c.l.b16 %v212
        %v265 = vunpack.c.l.b16 %v213
        %v266 = vunpack.c.l.b16 %v214
        %v267 = vunpack.c.l.b16 %v215
        %v268 = vunpack.c.l.b16 %v216
        %v269 = vunpack.c.l.b16 %v217
        %v270 = vunpack.c.l.b16 %v218
        %v271 = vunpack.c.l.b16 %v219
        %v272 = vunpack.c.l.b16 %v220
        %v273 = vunpack.c.l.b16 %v221
        %v274 = vunpack.c.l.b16 %v222
        %v275 = vunpack.c.l.b16 %v223
        %v276 = vunpack.c.l.b16 %v224
        %v277 = vunpack.c.l.b16 %v225
        %v278 = vunpack.c.l.b16 %v226
        %v279 = vpack.c.b16 %v256, %v255
        %v280 = vpack.c.b16 %v258, %v257
        %v281 = vpack.c.b16 %v260, %v259
        %v282 = vpack.c.b16 %v262, %v261
        %v283 = vpack.c.b16 %v264, %v263
        %v284 = vpack.c.b16 %v266, %v265
        %v285 = vpack.c.b16 %v268, %v267
        %v286 = vpack.c.b16 %v270, %v269
        %v287 = vpack.c.b16 %v272, %v271
        %v288 = vpack.c.b16 %v274, %v273
        %v289 = vpack.c.b16 %v276, %v275
        %v290 = vpack.c.b16 %v278, %v277
        %vm303 = vcmask 523264
        %v305 = vsel %vm303, %v202, 0
        %307 = vmatpush.bf16.msra.mxu0 %v286
        %308 = vmatpush.bf16.msra.mxu0 %v285
        %309 = vmatpush.bf16.msra.mxu0 %v284
        %310 = vmatpush.bf16.msra.mxu0 %v283
        %311 = vmatpush.bf16.msra.mxu0 %v282
        %312 = vmatpush.bf16.msra.mxu0 %v281
        %313 = vmatpush.bf16.msra.mxu0 %v280
        %314 = vmatpush.bf16.msra.mxu0 %v279
        %315 = vmatmul.bf16.gmra.mxu0 %v201
        %v316 = vpop.f32.mrf.mxu0
        %v317 = vadd.f32 %v229, %v316
        %v318 = vpop.f32.mrf.mxu0
        %v319 = vadd.f32 %v229, %v318
        %320 = vdwg.mxu0
        %321 = vmatpush.bf16.msra.mxu0 0
        %322 = vmatpush.bf16.msra.mxu0 0
        %323 = vmatpush.bf16.msra.mxu0 0
        %324 = vmatpush.bf16.msra.mxu0 0
        %325 = vmatpush.bf16.msra.mxu0 %v290
        %326 = vmatpush.bf16.msra.mxu0 %v289
        %327 = vmatpush.bf16.msra.mxu0 %v288
        %328 = vmatpush.bf16.msra.mxu0 %v287
        %329 = vmatmul.bf16.gmra.mxu0 %v305
        %v330 = vpop.f32.mrf.mxu0
        %v331 = vadd.f32 %v317, %v330
        %v332 = vpop.f32.mrf.mxu0
        %v333 = vadd.f32 %v319, %v332
        %334 = vdwg.mxu0
        %v335 = vld [vmem:[%s3] sm:$0xff]
        %v336 = vld [vmem:[%s3 + $0x8] sm:$0xff]
        %v337 = vadd.f32 %v331, %v335
        %v338 = vadd.f32 %v333, %v336
        %339 = vst.msk [vmem:[%s190] sm:$0xff] %vm303, %v337
        %340 = vst.msk [vmem:[%s190 + $0x8] sm:$0xff] %vm303, %v338
        %s341 = sand.u32 %s115, 1
        %s342 = scalar_lea.sflag [#allocation3], %s341
        %s343 = sand.u32 %s115, 1
        %s344 = smul.addr %s343, 16
        %s345 = scalar_lea.vmem [#allocation2], %s344
        // Predicated region
        $region37: #{tpu_custom_call.1} parent=35 // pred_check
          %p346 = pneg %p125
        $region38: #{tpu_custom_call.1} parent=35 // pred_check_branch
          %348 = sbr.rel (%p346) target = $region40
        $region39: #{tpu_custom_call.1} parent=35 // pred_region
          %350 = vsyncadd %s342, 0
          %s351 = smul.addr %s18, 2
          %s352 = smul.addr %s351, 8
          %s353 = scalar_lea.hbm %s4, %s352
          %s354 = sshll.u32 %s345, 4
          %s355 = int_to_ptr.vmem [resolvable:$true] %s354
          %s356 = sshll.u32 %s353, 4
          %s357 = int_to_ptr.hbm [resolvable:$true] %s356
          %362 = dma.vmem_to_hbm [thread:$0]  %s355, 256, %s357, %s342, 128, 128, 8
        $region40: #{tpu_custom_call.1} parent=35 // pred_fallthru
          _
      $region36: #{tpu_custom_call.1} parent=5 // pred_fallthru
        _
      %p363 = scmp.le.s32.totalorder 2, %s13
      // Predicated region
      $region41: #{tpu_custom_call.1} parent=5 // pred_check
        %p364 = pneg %p363
      $region42: #{tpu_custom_call.1} parent=5 // pred_check_branch
        %366 = sbr.rel (%p364) target = $region44
      $region43: #{tpu_custom_call.1} parent=5 // pred_region
        %s367 = ssub.s32 %s13, 2
        // Predicated region
        $region45: #{tpu_custom_call.1} parent=43 // pred_check
          %p368 = pneg %p131
        $region46: #{tpu_custom_call.1} parent=43 // pred_check_branch
          %370 = sbr.rel (%p368) target = $region48
        $region47: #{tpu_custom_call.1} parent=43 // pred_region
          %s371 = sand.u32 %s116, 1
          %s372 = scalar_lea.sflag [#allocation3], %s371
          %s373 = sand.u32 %s116, 1
          %s374 = smul.addr %s373, 16
          %s375 = scalar_lea.vmem [#allocation2], %s374
          %377 = dma.done %s372, 256
        $region48: #{tpu_custom_call.1} parent=43 // pred_fallthru
          _
      $region44: #{tpu_custom_call.1} parent=5 // pred_fallthru
        _
    $region6: #{tpu_custom_call.1} parent=1 // loop_footer
      %s17 = sadd.s32 1, %s13
    $region7: #{tpu_custom_call.1} parent=1 // loop_footer_branch
      %12 = sbr.rel target = $region3
    $region8: #{tpu_custom_call.1} parent=1 // loop_exit
      _
    %378 = vsyncpa [#allocation3], 1
    %s379 = scalar_lea.sflag [#allocation3], 1
    %380 = vsyncpa %s379, 1

</llo_original>
